<compile_context>
chip_gen: v7x
topology: tpu7x:2x2x1
jax: 0.10.0
libtpu: 0.0.40
codegen_flags: <defaults>
</compile_context>

<pallas_src>
import jax
import jax.numpy as jnp
from jax.experimental import pallas as pl
from jax.experimental.pallas import tpu as pltpu


# ---------------------------------------------------------------------------
# Modulation params in plain JAX (one-shot, tiny M=B): a = 1 + scale, b = shift
# ---------------------------------------------------------------------------
def _modulation_params(cond_embeds, w):
    c = cond_embeds.astype(jnp.float32)
    silu = c * jax.nn.sigmoid(c)                                   # SiLU in f32
    ss = jnp.dot(silu, w.astype(jnp.float32),
                 preferred_element_type=jnp.float32)               # (B, 2H) f32
    H = w.shape[1] // 2
    a = 1.0 + ss[:, :H]                                            # 1 + scale
    b = ss[:, H:]                                                  # shift
    return a, b                                                    # both f32


# ---------------------------------------------------------------------------
# Hot kernel: out = (h * a + b), f32 math, streamed over (batch, seq-tile) grid
# ---------------------------------------------------------------------------
def _modulate_kernel(a_ref, b_ref, h_ref, o_ref):
    # a_ref, b_ref: (1, H) f32 -- resident per batch row across the S axis
    # h_ref, o_ref: (TS, H)    -- streamed tiles (batch dim squeezed away)
    o_ref[...] = (h_ref[...] * a_ref[...] + b_ref[...]).astype(o_ref.dtype)


# ---------------------------------------------------------------------------
# Tile sizing
# ---------------------------------------------------------------------------
def _vmem_capacity_bytes():
    try:
        return int(pltpu.get_tpu_info().vmem_capacity_bytes)
    except Exception:
        return 64 << 20  # conservative (v7x per-TC)


def _pick_seq_tile(S, H, itemsize, budget_bytes, min_tiles=1):
    """Sequence-tile length: <= budget_bytes per streamed block, aligned to the
    dtype's sublane packing, preferring an even divisor of S."""
    row_align = 8 * max(1, 4 // max(1, itemsize))   # 8 f32, 16 bf16, 32 int8
    ts = budget_bytes // max(1, H * itemsize)
    if min_tiles > 1:
        ts = min(ts, -(-S // min_tiles))            # ceil(S / min_tiles)
    ts = min(ts, S)
    if ts >= S:
        return S
    ts = max(row_align, (ts // row_align) * row_align)
    if ts >= S:
        return S
    # Prefer a tile that divides S evenly (no ragged masked final tile).
    cand = ts
    while cand >= row_align:
        if S % cand == 0:
            return cand
        cand -= row_align
    return ts


# ---------------------------------------------------------------------------
# Wrapper
# ---------------------------------------------------------------------------
def adaln_modulation(hidden_states, cond_embeds, w, *, budget_bytes=None):
    """hidden_states: (B, S, H), cond_embeds: (B, Dc), w: (Dc, 2H) = mapper.weight.T."""
    B, S, H = hidden_states.shape
    Dc = cond_embeds.shape[1]
    assert w.shape == (Dc, 2 * H)

    # Hoisted SiLU + GEMM (plain JAX, f32); a/b stay f32 for reference-exact math.
    a, b = _modulation_params(cond_embeds, w)
    a3 = a.reshape(B, 1, H)
    b3 = b.reshape(B, 1, H)

    itemsize = jnp.dtype(hidden_states.dtype).itemsize
    vmem_cap = _vmem_capacity_bytes()
    if budget_bytes is None:
        budget_bytes = max(8 << 20, vmem_cap // 8)   # 8 MiB v7x, 16 MiB v5e/v6e

    # Guarantee >=2 grid steps when B == 1 so both v7x TensorCores get work.
    min_tiles = 2 if B == 1 else 1
    ts = _pick_seq_tile(S, H, itemsize, budget_bytes, min_tiles=min_tiles)
    grid = (B, pl.cdiv(S, ts))

    # Double-buffered in + out streamed blocks plus a/b and headroom.
    block_bytes = ts * H * itemsize
    vmem_limit = max(16 << 20, min(int(vmem_cap * 3 // 4),
                                   4 * block_bytes + (8 << 20)))

    return pl.pallas_call(
        _modulate_kernel,
        out_shape=jax.ShapeDtypeStruct((B, S, H), hidden_states.dtype),
        grid_spec=pltpu.PrefetchScalarGridSpec(
            num_scalar_prefetch=0,
            grid=grid,
            in_specs=[
                # (B, 1, H) f32 -> kernel sees (1, H); same block across S axis
                pl.BlockSpec((pl.Squeezed(), 1, H), lambda bi, si: (bi, 0, 0)),
                pl.BlockSpec((pl.Squeezed(), 1, H), lambda bi, si: (bi, 0, 0)),
                # (B, S, H) -> kernel sees (TS, H) streamed tiles
                pl.BlockSpec((pl.Squeezed(), ts, H), lambda bi, si: (bi, si, 0)),
            ],
            out_specs=pl.BlockSpec((pl.Squeezed(), ts, H),
                                   lambda bi, si: (bi, si, 0)),
        ),
        compiler_params=pltpu.CompilerParams(
            dimension_semantics=("parallel", "parallel"),
            vmem_limit_bytes=vmem_limit,
        ),
    )(a3, b3, hidden_states)


# ---------------------------------------------------------------------------
# Pure-JAX reference (matches the PyTorch forward, 3-D branch)
# ---------------------------------------------------------------------------
def reference(hidden_states, cond_embeds, w):
    c = cond_embeds.astype(jnp.float32)
    silu = c * jax.nn.sigmoid(c)
    ss = silu @ w.astype(jnp.float32)
    H = hidden_states.shape[-1]
    scale, shift = ss[:, :H], ss[:, H:]
    return (hidden_states.astype(jnp.float32) * (1.0 + scale[:, None, :])
            + shift[:, None, :]).astype(hidden_states.dtype)


if __name__ == "__main__":
    key = jax.random.PRNGKey(0)

    # --- Case 1: f32, multi-tile streaming path (forced small block budget) ---
    B, S, H, Dc = 2, 16, 128, 64
    k1, k2, k3, key = *jax.random.split(key, 3), jax.random.split(key, 4)[3]
    hidden_states = jax.random.normal(k1, (B, S, H), dtype=jnp.float32)
    cond_embeds = jax.random.normal(k2, (B, Dc), dtype=jnp.float32)
    bound = 1.0 / (Dc ** 0.5)
    w = jax.random.uniform(k3, (Dc, 2 * H), minval=-bound, maxval=bound,
                           dtype=jnp.float32)

    # budget forces TS=8 -> 2 tiles per batch row (exercises the streamed grid)
    out = adaln_modulation(hidden_states, cond_embeds, w,
                           budget_bytes=8 * H * 4)
    out = jax.block_until_ready(out)
    ref = reference(hidden_states, cond_embeds, w)
    assert out.shape == (B, S, H)
    assert jnp.allclose(out, ref, atol=1e-5, rtol=1e-5), "f32 mismatch vs reference"

    # --- Case 2: bf16 hidden, B=1 (min-parallel-steps path), default budget ---
    B2, S2, H2, Dc2 = 1, 32, 256, 32
    k4, k5, k6 = jax.random.split(key, 3)
    h_bf16 = jax.random.normal(k4, (B2, S2, H2), dtype=jnp.float32).astype(jnp.bfloat16)
    c2 = jax.random.normal(k5, (B2, Dc2), dtype=jnp.float32)
    bound2 = 1.0 / (Dc2 ** 0.5)
    w2 = jax.random.uniform(k6, (Dc2, 2 * H2), minval=-bound2, maxval=bound2,
                            dtype=jnp.float32)

    out2 = adaln_modulation(h_bf16, c2, w2)
    out2 = jax.block_until_ready(out2)
    ref2 = reference(h_bf16, c2, w2)
    assert out2.shape == (B2, S2, H2)
    assert jnp.allclose(out2.astype(jnp.float32), ref2.astype(jnp.float32),
                        atol=2e-2, rtol=2e-2), "bf16 mismatch vs reference"

    print("KERNEL_OK")
</pallas_src>

<mosaic_0001>
module attributes {stable_mosaic.version = 11 : i64} {
  func.func @_modulate_kernel(%arg0: i32, %arg1: i32, %arg2: memref<1x1x128xf32, #tpu.memory_space<vmem>>, %arg3: memref<1x1x128xf32, #tpu.memory_space<vmem>>, %arg4: memref<1x8x128xf32, #tpu.memory_space<vmem>>, %arg5: memref<1x8x128xf32, #tpu.memory_space<vmem>>) attributes {dimension_semantics = [#tpu.dimension_semantics<parallel>, #tpu.dimension_semantics<parallel>], iteration_bounds = array<i64: 2, 2>, scalar_prefetch = 0 : i64, scratch_operands = 0 : i64, tpu.core_type = #tpu.core_type<tc>, window_params = [{transform_indices = @transform_0, window_bounds = array<i64: 1, 1, 128>}, {transform_indices = @transform_1, window_bounds = array<i64: 1, 1, 128>}, {transform_indices = @transform_2, window_bounds = array<i64: 1, 8, 128>}, {transform_indices = @transform_3, window_bounds = array<i64: 1, 8, 128>}]} {
    %c0 = arith.constant 0 : index
    %c0_0 = arith.constant 0 : index
    %c0_1 = arith.constant 0 : index
    %0 = vector.load %arg4[%c0, %c0_0, %c0_1] : memref<1x8x128xf32, #tpu.memory_space<vmem>>, vector<1x8x128xf32>
    %1 = vector.shape_cast %0 : vector<1x8x128xf32> to vector<8x128xf32>
    %c0_2 = arith.constant 0 : index
    %c0_3 = arith.constant 0 : index
    %c0_4 = arith.constant 0 : index
    %2 = vector.load %arg2[%c0_2, %c0_3, %c0_4] : memref<1x1x128xf32, #tpu.memory_space<vmem>>, vector<1x1x128xf32>
    %3 = vector.shape_cast %2 : vector<1x1x128xf32> to vector<1x128xf32>
    %4 = vector.broadcast %3 : vector<1x128xf32> to vector<8x128xf32>
    %5 = arith.mulf %1, %4 : vector<8x128xf32>
    %c0_5 = arith.constant 0 : index
    %c0_6 = arith.constant 0 : index
    %c0_7 = arith.constant 0 : index
    %6 = vector.load %arg3[%c0_5, %c0_6, %c0_7] : memref<1x1x128xf32, #tpu.memory_space<vmem>>, vector<1x1x128xf32>
    %7 = vector.shape_cast %6 : vector<1x1x128xf32> to vector<1x128xf32>
    %8 = vector.broadcast %7 : vector<1x128xf32> to vector<8x128xf32>
    %9 = arith.addf %5, %8 : vector<8x128xf32>
    %c0_8 = arith.constant 0 : index
    %c0_9 = arith.constant 0 : index
    %c0_10 = arith.constant 0 : index
    %10 = vector.load %arg5[%c0_8, %c0_9, %c0_10] : memref<1x8x128xf32, #tpu.memory_space<vmem>>, vector<1x8x128xf32>
    %11 = vector.shape_cast %10 : vector<1x8x128xf32> to vector<8x128xf32>
    %12 = vector.shape_cast %9 : vector<8x128xf32> to vector<1x8x128xf32>
    tpu.vector_store %arg5[%c0_8, %c0_9, %c0_10], %12 {strides = array<i32>} : memref<1x8x128xf32, #tpu.memory_space<vmem>>, vector<1x8x128xf32>,
    return
  }
  func.func @transform_0(%arg0: i32, %arg1: i32) -> (i32, i32, i32) {
    %c0_i32 = arith.constant 0 : i32
    %c0_i32_0 = arith.constant 0 : i32
    %c0_i32_1 = arith.constant 0 : i32
    return %arg0, %c0_i32, %c0_i32_0 : i32, i32, i32
  }
  func.func @transform_1(%arg0: i32, %arg1: i32) -> (i32, i32, i32) {
    %c0_i32 = arith.constant 0 : i32
    %c0_i32_0 = arith.constant 0 : i32
    %c0_i32_1 = arith.constant 0 : i32
    return %arg0, %c0_i32, %c0_i32_0 : i32, i32, i32
  }
  func.func @transform_2(%arg0: i32, %arg1: i32) -> (i32, i32, i32) {
    %c0_i32 = arith.constant 0 : i32
    %c0_i32_0 = arith.constant 0 : i32
    return %arg0, %arg1, %c0_i32 : i32, i32, i32
  }
  func.func @transform_3(%arg0: i32, %arg1: i32) -> (i32, i32, i32) {
    %c0_i32 = arith.constant 0 : i32
    %c0_i32_0 = arith.constant 0 : i32
    return %arg0, %arg1, %c0_i32 : i32, i32, i32
  }
}

</mosaic_0001>

<llo_original>
// kernel: tpu_custom_call.1
$region0: #{tpu_custom_call.1}
  #allocation0 [shape = 'u32[]', space=smem, size = 0x4, offset = 0x4, fixed_abs, tag = 'smem constant byte address 0x4 - core index']
  #allocation1 [shape = 'u32[144,128]{1,0:T(1,128)}', space=vmem, size = 0x12000, scoped, tag = 'internal scratch']
  %s0 = inlined_call_operand.hbm [shape: f32[2,1,128], index: 0, kind: input, shape index: {}]
  %s1 = inlined_call_operand.vmem [shape: f32[2,1,128], index: 1, kind: input, shape index: {}]
  %s2 = inlined_call_operand.hbm [shape: f32[2,16,128], index: 2, kind: input, shape index: {}]
  %s3 = inlined_call_operand.hbm [shape: f32[2,16,128], index: 3, kind: output, shape index: {}]
  %s4 = sld [smem:[#allocation0]]
  $region53: #{tpu_custom_call.1} parent=0
    _
  %s6 = ssub.s32 1, %s4
  %s7 = scalar_select 0, %s6, %s4
  $region1: #{tpu_custom_call.1} parent=0
    #allocation2 [shape = 'u8[1024]{0}', space=vmem, size = 0x400, scoped, tag = 'input window, operand 0']
    #allocation3 [shape = 's32[2]{0}', space=sflag, size = 0x8, scoped, tag = 'scoped memory for tpu_custom_call.1']
    #allocation4 [shape = 's32[2]{0}', space=sflag, size = 0x8, scoped, tag = 'scoped memory for tpu_custom_call.1']
    #allocation5 [shape = 'u8[8192]{0}', space=vmem, size = 0x2000, scoped, tag = 'input window, operand 2']
    #allocation6 [shape = 's32[2]{0}', space=sflag, size = 0x8, scoped, tag = 'scoped memory for tpu_custom_call.1']
    #allocation7 [shape = 'u8[8192]{0}', space=vmem, size = 0x2000, scoped, tag = 'output window, operand 0']
    %8 = vsyncpa [#allocation3], 0
    %s9 = scalar_lea.sflag [#allocation3], 1
    %10 = vsyncpa %s9, 0
    %11 = vsyncpa [#allocation6], 0
    %s12 = scalar_lea.sflag [#allocation6], 1
    %13 = vsyncpa %s12, 0
    %14 = vsyncpa [#allocation4], 0
    %s15 = scalar_lea.sflag [#allocation4], 1
    %16 = vsyncpa %s15, 0
    loop: start=0, step=1, limit=6
    $region2: #{tpu_custom_call.1} parent=1 // loop_pre_header
      _
    $region3: #{tpu_custom_call.1} parent=1 // loop_header
      %s18 = sphi 0, %s22
      %p19 = scmp.ge.s32.totalorder %s18, 6
      %s25 = sphi 0, %s37
      %s26 = sphi 0, %s33
      %s27 = sphi 0, %s25
      %s28 = sphi 0, %s26
      %s29 = sphi 0, %s27
      %s30 = sphi 0, %s28
      %s40 = sphi 0, %s42
      %s43 = sphi 0, %s40
      %s44 = sphi 0, %s43
      %s60 = sphi 0, %s44
      %s66 = sphi 0, %s68
      %s69 = sphi 0, %s66
      %s70 = sphi 0, %s69
      %s86 = sphi 0, %s70
      %s94 = sphi 0, %s96
      %s97 = sphi 0, %s94
      %s98 = sphi 0, %s97
      %s114 = sphi 0, %s98
      %s122 = sphi 0, %s124
      %s125 = sphi 0, %s122
      %s126 = sphi 0, %s125
      %s142 = sphi 0, %s126
    $region4: #{tpu_custom_call.1} parent=1 // loop_header_branch
      %21 = sbr.rel (%p19) target = $region8
    $region5: #{tpu_custom_call.1} parent=1 // loop_body
      %s23 = ssub.s32 %s18, 1
      %s24 = ssub.s32 %s18, 2
      %s31 = sadd.s32 1, %s26
      %p32 = scmp.ge.s32.totalorder %s31, 2
      %s33 = scalar_select %p32, 0, %s31
      %s34 = sadd.s32 1, %s25
      %s35 = scalar_select %p32, %s34, %s25
      %p36 = scmp.ge.s32.totalorder %s35, 2
      %s37 = scalar_select %p36, 0, %s35
      %s38 = ssub.s32 %s25, %s37
      %p39 = scmp.eq.s32.totalorder %s38, 0
      %s41 = sadd.s32 %s40, 1
      %s42 = scalar_select %p39, %s40, %s41
      %p45 = pneg %p39
      %p46 = scmp.eq.s32.totalorder %s18, 3
      %p47 = por %p45, %p46
      %p48 = scmp.ne.s32.totalorder %s40, %s43
      %p49 = scmp.eq.s32.totalorder %s18, 0
      %p50 = por %p48, %p49
      %p51 = scmp.ne.s32.totalorder %s40, %s43
      %p52 = scmp.eq.s32.totalorder %s23, 3
      %p53 = por %p51, %p52
      %p54 = scmp.ne.s32.totalorder %s43, %s44
      %p55 = scmp.eq.s32.totalorder %s23, 0
      %p56 = por %p54, %p55
      %p57 = scmp.ne.s32.totalorder %s43, %s44
      %p58 = scmp.eq.s32.totalorder %s24, 3
      %p59 = por %p57, %p58
      %p61 = scmp.ne.s32.totalorder %s44, %s60
      %p62 = scmp.eq.s32.totalorder %s24, 0
      %p63 = por %p61, %p62
      %s64 = ssub.s32 %s25, %s37
      %p65 = scmp.eq.s32.totalorder %s64, 0
      %s67 = sadd.s32 %s66, 1
      %s68 = scalar_select %p65, %s66, %s67
      %p71 = pneg %p65
      %p72 = scmp.eq.s32.totalorder %s18, 3
      %p73 = por %p71, %p72
      %p74 = scmp.ne.s32.totalorder %s66, %s69
      %p75 = scmp.eq.s32.totalorder %s18, 0
      %p76 = por %p74, %p75
      %p77 = scmp.ne.s32.totalorder %s66, %s69
      %p78 = scmp.eq.s32.totalorder %s23, 3
      %p79 = por %p77, %p78
      %p80 = scmp.ne.s32.totalorder %s69, %s70
      %p81 = scmp.eq.s32.totalorder %s23, 0
      %p82 = por %p80, %p81
      %p83 = scmp.ne.s32.totalorder %s69, %s70
      %p84 = scmp.eq.s32.totalorder %s24, 3
      %p85 = por %p83, %p84
      %p87 = scmp.ne.s32.totalorder %s70, %s86
      %p88 = scmp.eq.s32.totalorder %s24, 0
      %p89 = por %p87, %p88
      %s90 = ssub.s32 %s25, %s37
      %s91 = ssub.s32 %s26, %s33
      %s92 = sor.u32 %s90, %s91
      %p93 = scmp.eq.s32.totalorder %s92, 0
      %s95 = sadd.s32 %s94, 1
      %s96 = scalar_select %p93, %s94, %s95
      %p99 = pneg %p93
      %p100 = scmp.eq.s32.totalorder %s18, 3
      %p101 = por %p99, %p100
      %p102 = scmp.ne.s32.totalorder %s94, %s97
      %p103 = scmp.eq.s32.totalorder %s18, 0
      %p104 = por %p102, %p103
      %p105 = scmp.ne.s32.totalorder %s94, %s97
      %p106 = scmp.eq.s32.totalorder %s23, 3
      %p107 = por %p105, %p106
      %p108 = scmp.ne.s32.totalorder %s97, %s98
      %p109 = scmp.eq.s32.totalorder %s23, 0
      %p110 = por %p108, %p109
      %p111 = scmp.ne.s32.totalorder %s97, %s98
      %p112 = scmp.eq.s32.totalorder %s24, 3
      %p113 = por %p111, %p112
      %p115 = scmp.ne.s32.totalorder %s98, %s114
      %p116 = scmp.eq.s32.totalorder %s24, 0
      %p117 = por %p115, %p116
      %s118 = ssub.s32 %s25, %s37
      %s119 = ssub.s32 %s26, %s33
      %s120 = sor.u32 %s118, %s119
      %p121 = scmp.eq.s32.totalorder %s120, 0
      %s123 = sadd.s32 %s122, 1
      %s124 = scalar_select %p121, %s122, %s123
      %p127 = pneg %p121
      %p128 = scmp.eq.s32.totalorder %s18, 3
      %p129 = por %p127, %p128
      %p130 = scmp.ne.s32.totalorder %s122, %s125
      %p131 = scmp.eq.s32.totalorder %s18, 0
      %p132 = por %p130, %p131
      %p133 = scmp.ne.s32.totalorder %s122, %s125
      %p134 = scmp.eq.s32.totalorder %s23, 3
      %p135 = por %p133, %p134
      %p136 = scmp.ne.s32.totalorder %s125, %s126
      %p137 = scmp.eq.s32.totalorder %s23, 0
      %p138 = por %p136, %p137
      %p139 = scmp.ne.s32.totalorder %s125, %s126
      %p140 = scmp.eq.s32.totalorder %s24, 3
      %p141 = por %p139, %p140
      %p143 = scmp.ne.s32.totalorder %s126, %s142
      %p144 = scmp.eq.s32.totalorder %s24, 0
      %p145 = por %p143, %p144
      %p146 = scmp.le.s32.totalorder 1, %s18
      %p147 = scmp.lt.s32.totalorder %s18, 5
      %p148 = pnand %p146, %p147
      %p149 = pneg %p148
      // Predicated region
      $region9: #{tpu_custom_call.1} parent=5 // pred_check
        _
      $region10: #{tpu_custom_call.1} parent=5 // pred_check_branch
        %151 = sbr.rel (%p148) target = $region12
      $region11: #{tpu_custom_call.1} parent=5 // pred_region
        %s152 = ssub.s32 %s18, 1
      $region12: #{tpu_custom_call.1} parent=5 // pred_fallthru
        _
      %p153 = scmp.lt.s32.totalorder %s18, 4
      // Predicated region
      $region13: #{tpu_custom_call.1} parent=5 // pred_check
        %p154 = pneg %p153
      $region14: #{tpu_custom_call.1} parent=5 // pred_check_branch
        %156 = sbr.rel (%p154) target = $region16
      $region15: #{tpu_custom_call.1} parent=5 // pred_region
        // Predicated region
        $region17: #{tpu_custom_call.1} parent=15 // pred_check
          %p157 = pneg %p50
        $region18: #{tpu_custom_call.1} parent=15 // pred_check_branch
          %159 = sbr.rel (%p157) target = $region20
        $region19: #{tpu_custom_call.1} parent=15 // pred_region
          %s160 = sand.u32 %s40, 1
          %s161 = scalar_lea.sflag [#allocation3], %s160
          %s162 = sand.u32 %s40, 1
          %s163 = scalar_lea.vmem [#allocation2], %s162
          %s165 = ssub.s32 16, 16
          %166 = vsyncadd %s161, %s165
          %s167 = smul.addr %s25, 16
          %s168 = scalar_lea.hbm %s0, %s167
          %s170 = sshll.u32 %s163, 4
          %s171 = int_to_ptr.vmem [resolvable:$true] %s170
          %173 = dma.hbm_to_vmem [thread:$0]  %s168, 16, %s171, %s161
        $region20: #{tpu_custom_call.1} parent=15 // pred_fallthru
          _
        // Predicated region
        $region21: #{tpu_custom_call.1} parent=15 // pred_check
          %p174 = pneg %p76
        $region22: #{tpu_custom_call.1} parent=15 // pred_check_branch
          %176 = sbr.rel (%p174) target = $region24
        $region23: #{tpu_custom_call.1} parent=15 // pred_region
          %p177 = scmp.lt.s32.totalorder %s25, 1
          %s178 = scalar_select %p177, %s25, 1
          %s179 = scalar_lea.vmem %s1, %s178
        $region24: #{tpu_custom_call.1} parent=15 // pred_fallthru
          _
        // Predicated region
        $region25: #{tpu_custom_call.1} parent=15 // pred_check
          %p180 = pneg %p104
        $region26: #{tpu_custom_call.1} parent=15 // pred_check_branch
          %182 = sbr.rel (%p180) target = $region28
        $region27: #{tpu_custom_call.1} parent=15 // pred_region
          %s183 = sand.u32 %s94, 1
          %s184 = scalar_lea.sflag [#allocation6], %s183
          %s185 = sand.u32 %s94, 1
          %s186 = smul.addr %s185, 8
          %s187 = scalar_lea.vmem [#allocation5], %s186
          %s189 = ssub.s32 128, 128
          %190 = vsyncadd %s184, %s189
          %s191 = smul.addr %s25, 2
          %s192 = sadd.s32 %s26, %s191
          %s193 = smul.addr %s192, 128
          %s194 = scalar_lea.hbm %s2, %s193
          %s196 = sshll.u32 %s187, 4
          %s197 = int_to_ptr.vmem [resolvable:$true] %s196
          %199 = dma.hbm_to_vmem [thread:$0]  %s194, 128, %s197, %s184
        $region28: #{tpu_custom_call.1} parent=15 // pred_fallthru
          _
      $region16: #{tpu_custom_call.1} parent=5 // pred_fallthru
        _
      %p200 = scmp.le.s32.totalorder 1, %s18
      %p201 = scmp.lt.s32.totalorder %s18, 5
      %p202 = pnand %p200, %p201
      %p203 = pneg %p202
      // Predicated region
      $region29: #{tpu_custom_call.1} parent=5 // pred_check
        _
      $region30: #{tpu_custom_call.1} parent=5 // pred_check_branch
        %205 = sbr.rel (%p202) target = $region32
      $region31: #{tpu_custom_call.1} parent=5 // pred_region
        %s206 = ssub.s32 %s18, 1
        %s207 = sand.u32 %s43, 1
        %s208 = scalar_lea.sflag [#allocation3], %s207
        %s209 = sand.u32 %s43, 1
        %s210 = scalar_lea.vmem [#allocation2], %s209
        // Predicated region
        $region33: #{tpu_custom_call.1} parent=31 // pred_check
          %p211 = pneg %p56
        $region34: #{tpu_custom_call.1} parent=31 // pred_check_branch
          %213 = sbr.rel (%p211) target = $region36
        $region35: #{tpu_custom_call.1} parent=31 // pred_region
          %214 = dma.done %s208, 16
        $region36: #{tpu_custom_call.1} parent=31 // pred_fallthru
          _
        %s215 = sand.u32 %s97, 1
        %s216 = scalar_lea.sflag [#allocation6], %s215
        %s217 = sand.u32 %s97, 1
        %s218 = smul.addr %s217, 8
        %s219 = scalar_lea.vmem [#allocation5], %s218
        // Predicated region
        $region37: #{tpu_custom_call.1} parent=31 // pred_check
          %p220 = pneg %p110
        $region38: #{tpu_custom_call.1} parent=31 // pred_check_branch
          %222 = sbr.rel (%p220) target = $region40
        $region39: #{tpu_custom_call.1} parent=31 // pred_region
          %223 = dma.done %s216, 128
        $region40: #{tpu_custom_call.1} parent=31 // pred_fallthru
          _
        %s224 = sand.u32 %s43, 1
        %s225 = scalar_lea.sflag [#allocation3], %s224
        %s226 = sand.u32 %s43, 1
        %s227 = scalar_lea.vmem [#allocation2], %s226
        %p228 = pneg %p56
        %p229 = pneg %p53
        %p230 = scmp.lt.s32.totalorder %s27, 1
        %s231 = scalar_select %p230, %s27, 1
        %s232 = scalar_lea.vmem %s1, %s231
        %p233 = pneg %p82
        %p234 = pneg %p79
        %s235 = sand.u32 %s97, 1
        %s236 = scalar_lea.sflag [#allocation6], %s235
        %s237 = sand.u32 %s97, 1
        %s238 = smul.addr %s237, 8
        %s239 = scalar_lea.vmem [#allocation5], %s238
        %p240 = pneg %p110
        %p241 = pneg %p107
        %p242 = pneg %p138
        %p243 = pneg %p135
        %s244 = sand.u32 %s125, 1
        %s245 = scalar_lea.sflag [#allocation4], %s244
        %s246 = sand.u32 %s125, 1
        %s247 = smul.addr %s246, 8
        %s248 = scalar_lea.vmem [#allocation7], %s247
        %p249 = scmp.lt.s32.totalorder %s27, 1
        %s250 = scalar_select %p249, %s27, 1
        %s251 = scalar_lea.vmem %s1, %s250
        %v252 = vld [vmem:[%s219] sm:$0xff]
        %v253 = vld [vmem:[%s210] sm:$0x1]
        %v255 = vlaneseq
        %v256 = vshrl.u32 %v255, 7
        %v257 = vsub.s32 0, %v256
        %v258 = vrot.slane %v253, %v257
        %v260 = vmul.f32 %v252, %v258
        %v261 = vld [vmem:[%s251] sm:$0x1]
        %v263 = vlaneseq
        %v264 = vshrl.u32 %v263, 7
        %v265 = vsub.s32 0, %v264
        %v266 = vrot.slane %v261, %v265
        %v268 = vadd.f32 %v260, %v266
        %269 = vst [vmem:[%s248] sm:$0xff] %v268
        %s270 = sand.u32 %s125, 1
        %s271 = scalar_lea.sflag [#allocation4], %s270
        %s272 = sand.u32 %s125, 1
        %s273 = smul.addr %s272, 8
        %s274 = scalar_lea.vmem [#allocation7], %s273
        // Predicated region
        $region41: #{tpu_custom_call.1} parent=31 // pred_check
          %p275 = pneg %p135
        $region42: #{tpu_custom_call.1} parent=31 // pred_check_branch
          %277 = sbr.rel (%p275) target = $region44
        $region43: #{tpu_custom_call.1} parent=31 // pred_region
          %s279 = ssub.s32 128, 128
          %280 = vsyncadd %s271, %s279
          %s281 = smul.addr %s27, 2
          %s282 = sadd.s32 %s28, %s281
          %s283 = smul.addr %s282, 128
          %s284 = scalar_lea.hbm %s3, %s283
          %s286 = sshll.u32 %s274, 4
          %s287 = int_to_ptr.vmem [resolvable:$true] %s286
          %289 = dma.vmem_to_hbm [thread:$0]  %s287, 128, %s284, %s271
        $region44: #{tpu_custom_call.1} parent=31 // pred_fallthru
          _
      $region32: #{tpu_custom_call.1} parent=5 // pred_fallthru
        _
      %p290 = scmp.le.s32.totalorder 2, %s18
      // Predicated region
      $region45: #{tpu_custom_call.1} parent=5 // pred_check
        %p291 = pneg %p290
      $region46: #{tpu_custom_call.1} parent=5 // pred_check_branch
        %293 = sbr.rel (%p291) target = $region48
      $region47: #{tpu_custom_call.1} parent=5 // pred_region
        %s294 = ssub.s32 %s18, 2
        // Predicated region
        $region49: #{tpu_custom_call.1} parent=47 // pred_check
          %p295 = pneg %p141
        $region50: #{tpu_custom_call.1} parent=47 // pred_check_branch
          %297 = sbr.rel (%p295) target = $region52
        $region51: #{tpu_custom_call.1} parent=47 // pred_region
          %s298 = sand.u32 %s126, 1
          %s299 = scalar_lea.sflag [#allocation4], %s298
          %s300 = sand.u32 %s126, 1
          %s301 = smul.addr %s300, 8
          %s302 = scalar_lea.vmem [#allocation7], %s301
          %303 = dma.done %s299, 128
        $region52: #{tpu_custom_call.1} parent=47 // pred_fallthru
          _
      $region48: #{tpu_custom_call.1} parent=5 // pred_fallthru
        _
    $region6: #{tpu_custom_call.1} parent=1 // loop_footer
      %s22 = sadd.s32 1, %s18
    $region7: #{tpu_custom_call.1} parent=1 // loop_footer_branch
      %17 = sbr.rel target = $region3
    $region8: #{tpu_custom_call.1} parent=1 // loop_exit
      _
    %304 = vsyncpa [#allocation3], 1
    %s305 = scalar_lea.sflag [#allocation3], 1
    %306 = vsyncpa %s305, 1
    %307 = vsyncpa [#allocation6], 1
    %s308 = scalar_lea.sflag [#allocation6], 1
    %309 = vsyncpa %s308, 1
    %310 = vsyncpa [#allocation4], 1
    %s311 = scalar_lea.sflag [#allocation4], 1
    %312 = vsyncpa %s311, 1

</llo_original>
